<compile_context>
chip_gen: v7x
topology: tpu7x:2x2x1
jax: 0.10.0
libtpu: 0.0.40
codegen_flags: <defaults>
</compile_context>

<pallas_src>
import math

import jax
import jax.numpy as jnp
from jax import lax
from jax.experimental import pallas as pl
from jax.experimental.pallas import tpu as pltpu


# ----------------------------------------------------------------------------
# Generic tiled fused linear kernel: y = x @ w_t + b   (w_t pre-transposed)
# bf16 MXU operands, f32 accumulation.
# ----------------------------------------------------------------------------
def _linear_kernel(x_ref, w_ref, b_ref, o_ref, acc_ref):
    @pl.when(pl.program_id(2) == 0)
    def _():
        acc_ref[...] = jnp.zeros_like(acc_ref)

    acc_ref[...] += jnp.dot(
        x_ref[...].astype(jnp.bfloat16),
        w_ref[...].astype(jnp.bfloat16),
        preferred_element_type=jnp.float32,
    )

    @pl.when(pl.program_id(2) == pl.num_programs(2) - 1)
    def _():
        o_ref[...] = (acc_ref[...] + b_ref[...]).astype(o_ref.dtype)


def _tile(dim, target):
    # Use `target`-sized tiles when they divide the dim; otherwise one full block
    # (all toy shapes in this script fall in the full-block case).
    return target if (dim >= target and dim % target == 0) else dim


def pallas_linear(x, w_t, b2d, *, tm=256, tn=256, tk=512):
    """x: (M, K) f32; w_t: (K, N) pre-transposed bf16 weight; b2d: (1, N) f32."""
    M, K = x.shape
    K2, N = w_t.shape
    assert K == K2
    tm, tn, tk = _tile(M, tm), _tile(N, tn), _tile(K, tk)
    grid = (M // tm, N // tn, K // tk)
    return pl.pallas_call(
        _linear_kernel,
        out_shape=jax.ShapeDtypeStruct((M, N), jnp.float32),
        grid=grid,
        in_specs=[
            pl.BlockSpec((tm, tk), lambda i, j, k: (i, k)),
            pl.BlockSpec((tk, tn), lambda i, j, k: (k, j)),
            pl.BlockSpec((1, tn), lambda i, j, k: (0, j)),
        ],
        out_specs=pl.BlockSpec((tm, tn), lambda i, j, k: (i, j)),
        scratch_shapes=[pltpu.VMEM((tm, tn), jnp.float32)],
        compiler_params=pltpu.CompilerParams(
            dimension_semantics=("parallel", "parallel", "arbitrary")
        ),
    )(x, w_t, b2d)


# ----------------------------------------------------------------------------
# Fused prompt-path kernel:
#   proj_coop_pre + proj_vpt_pre + CLIP ResidualAttentionBlock
#   (LN -> 1-head MHA -> +res -> LN -> MLP(QuickGELU) -> +res)
# Output: (L*N, D) = L-major flattening of the transformer output sequence.
# ----------------------------------------------------------------------------
def _prompt_kernel(coop_ref, vpt_ref, wc_ref, wv_ref, vec_ref,
                   qkvw_ref, qkvb_ref, outw_ref, fcw_ref, fcb_ref, prw_ref,
                   mask_ref, o_ref):
    D = wc_ref.shape[1]
    eps = 1e-5

    def mm(a, w):  # bf16 MXU operands, f32 accumulation
        return jnp.dot(a.astype(jnp.bfloat16), w.astype(jnp.bfloat16),
                       preferred_element_type=jnp.float32)

    vecs = vec_ref[...]                # (8, D) f32 packed per-feature vectors
    bc_pre = vecs[0:1, :]
    bv_pre = vecs[1:2, :]
    ln1_g = vecs[2:3, :]
    ln1_b = vecs[3:4, :]
    out_b = vecs[4:5, :]
    ln2_g = vecs[5:6, :]
    ln2_b = vecs[6:7, :]
    pr_b = vecs[7:8, :]

    # --- proj_coop_pre / proj_vpt_pre, concatenated along the prompt axis ----
    x_coop = mm(coop_ref[...], wc_ref[...]) + bc_pre     # (n_coop*Lp, D)
    x_vpt = mm(vpt_ref[...], wv_ref[...]) + bv_pre       # (n_vpt*Lp, D)
    x = jnp.concatenate([x_coop, x_vpt], axis=0)         # (L*N, D), L-major flat

    def layer_norm(z, g, b):
        mu = jnp.mean(z, axis=-1, keepdims=True)
        var = jnp.mean((z - mu) ** 2, axis=-1, keepdims=True)
        return (z - mu) * lax.rsqrt(var + eps) * g + b

    # --- LN1 -> 1-head MultiheadAttention -> residual ------------------------
    xn = layer_norm(x, ln1_g, ln1_b)
    qkv = mm(xn, qkvw_ref[...]) + qkvb_ref[...]          # (L*N, 3D)
    scale = 1.0 / math.sqrt(D)
    q = qkv[:, 0 * D:1 * D] * scale
    k = qkv[:, 1 * D:2 * D]
    v = qkv[:, 2 * D:3 * D]

    # single (L*N, L*N) MXU matmul; cross-batch pairs masked out additively
    scores = lax.dot_general(
        q.astype(jnp.bfloat16), k.astype(jnp.bfloat16),
        (((1,), (1,)), ((), ())), preferred_element_type=jnp.float32)
    scores = scores + mask_ref[...]
    scores = scores - jnp.max(scores, axis=-1, keepdims=True)
    p = jnp.exp(scores)
    p = p * pl.reciprocal(jnp.sum(p, axis=-1, keepdims=True), approx=True)
    attn = mm(p, v)                                      # (L*N, D)
    x = x + mm(attn, outw_ref[...]) + out_b

    # --- LN2 -> MLP (QuickGELU) -> residual ----------------------------------
    xn2 = layer_norm(x, ln2_g, ln2_b)
    h = mm(xn2, fcw_ref[...]) + fcb_ref[...]
    h = h * jax.nn.sigmoid(1.702 * h)                    # QuickGELU
    x = x + mm(h, prw_ref[...]) + pr_b

    o_ref[...] = x.astype(o_ref.dtype)


def pallas_prompt_path(params):
    p = params
    coop = p["coop_embeddings"]
    vpt = p["vpt_embeddings"]
    n_coop, Lp, Dc = coop.shape
    n_vpt, _, Dv = vpt.shape
    D = p["dim_transformer"]
    LN = (n_coop + n_vpt) * Lp

    args = [
        coop.reshape(n_coop * Lp, Dc),
        vpt.reshape(n_vpt * Lp, Dv),
        p["proj_coop_pre_wt"], p["proj_vpt_pre_wt"],
        p["prompt_vec_pack"],
        p["tf_qkv_wt"], p["tf_qkv_b"],
        p["tf_out_wt"],
        p["tf_fc_wt"], p["tf_fc_b"],
        p["tf_proj_wt"],
        p["attn_bias"],
    ]

    def spec(shape):
        nd = len(shape)
        return pl.BlockSpec(shape, lambda i, _n=nd: (0,) * _n)

    return pl.pallas_call(
        _prompt_kernel,
        out_shape=jax.ShapeDtypeStruct((LN, D), jnp.float32),
        grid=(1,),
        in_specs=[spec(a.shape) for a in args],
        out_specs=spec((LN, D)),
        compiler_params=pltpu.CompilerParams(dimension_semantics=("arbitrary",)),
    )(*args)


# ----------------------------------------------------------------------------
# Synthetic encoders.
# TODO(synk): image_encoder / text_encoder are externally injected CLIP modules
# in the original; these are small deterministic stand-ins whose matmul hot
# paths run through the Pallas linear kernel.
# ----------------------------------------------------------------------------
def text_encoder(coop_embs, class_embs, tparams):
    ctx = jnp.mean(coop_embs, axis=(0, 1))               # (Dc,) pooled context
    feats = class_embs + ctx[None, :]                    # (num_classes, Dc)
    return pallas_linear(feats, tparams["w_text_t"], tparams["b_text"])


def image_encoder(x, vpt_embs, iparams):
    # TODO(synk): at realistic image sizes the patch unfold should move into the
    # patch-linear kernel's BlockSpec/index_map instead of this XLA transpose.
    B, C, H, W = x.shape
    P = iparams["patch"]
    Dv = vpt_embs.shape[-1]
    patches = (
        x.reshape(B, C, H // P, P, W // P, P)
        .transpose(0, 2, 4, 1, 3, 5)
        .reshape(B * (H // P) * (W // P), C * P * P)
    )
    tok = pallas_linear(patches, iparams["w_patch_t"], iparams["b_patch"])
    tok = tok.reshape(B, (H // P) * (W // P), Dv)
    n_vpt_tok = vpt_embs.shape[0] * vpt_embs.shape[1]
    vpt_tokens = jnp.broadcast_to(vpt_embs.reshape(1, n_vpt_tok, Dv),
                                  (B, n_vpt_tok, Dv))
    seq = jnp.concatenate([tok, vpt_tokens], axis=1)
    pooled = jnp.mean(seq, axis=1)                       # (B, Dv)
    return pallas_linear(pooled, iparams["w_img_t"], iparams["b_img"])


# ----------------------------------------------------------------------------
# UPTModel forward
# ----------------------------------------------------------------------------
def upt_forward(params, x, classes):
    coop = params["coop_embeddings"]                     # (n_coop, Lp, Dc)
    vpt = params["vpt_embeddings"]                       # (n_vpt, Lp, Dv)
    n_coop, coop_len, coop_dim = coop.shape
    n_vpt, vpt_len, vpt_dim = vpt.shape

    # Fused: proj_coop_pre + proj_vpt_pre + 1-layer/1-head CLIP transformer.
    # (The torch cat with vpt_embeddings_deep is dead code — overwritten — so
    # it is omitted here.)
    out_flat = pallas_prompt_path(params)                # ((n_coop+n_vpt)*Lp, D)

    # torch: output_seq.to(torch.float16) then .to(self.dtype)
    # TODO(synk): fp16 round-trip kept as an XLA cast between the two fused
    # kernels (Mosaic f16 cast support is not uniform across v5e/v6e/v7x).
    out_flat = out_flat.astype(jnp.float16).astype(jnp.float32)

    # proj_coop_post and proj_vpt_post stacked into one lane-denser matmul.
    post = pallas_linear(out_flat, params["proj_post_wt"], params["proj_post_b"])
    coop_embs = post[: n_coop * coop_len, :coop_dim].reshape(
        n_coop, coop_len, coop_dim)
    vpt_embs = post[n_coop * coop_len:, coop_dim:coop_dim + vpt_dim].reshape(
        n_vpt, vpt_len, vpt_dim)

    text_out = text_encoder(coop_embs, classes, params["text_enc"])
    visual_out = image_encoder(x, vpt_embs, params["img_enc"])

    # Norms are computed but unused in the PyTorch forward (dead values).
    _ = text_out / jnp.linalg.norm(text_out, axis=-1, keepdims=True)
    _ = visual_out / jnp.linalg.norm(visual_out, axis=-1, keepdims=True)

    return text_out, visual_out


# ----------------------------------------------------------------------------
# Deterministic parameter construction (construction-time packing of weights:
# pre-transposed (in, out) layout, bf16 matmul weights, packed small vectors).
# ----------------------------------------------------------------------------
def make_params(key, n_coop=2, n_vpt=2, prompt_len=8, coop_dim=32, vpt_dim=32,
                dim_transformer=32, num_classes=4, embed_dim=32,
                img_channels=4, patch=4):
    ks = jax.random.split(key, 32)
    it = iter(range(32))

    def nrm(shape, scale=0.02):
        return (scale * jax.random.normal(ks[next(it)], shape)).astype(jnp.float32)

    def w_t(out_dim, in_dim):
        # torch nn.Linear weight is (out, in); store transposed (in, out) bf16 once.
        return nrm((out_dim, in_dim)).T.astype(jnp.bfloat16)

    D = dim_transformer
    Lp = prompt_len
    LN = (n_coop + n_vpt) * Lp

    proj_coop_post_wt = w_t(coop_dim, D)                 # (D, coop_dim)
    proj_vpt_post_wt = w_t(vpt_dim, D)                   # (D, vpt_dim)

    # Packed per-feature vectors for the fused prompt kernel (one DMA):
    # rows = [bc_pre, bv_pre, ln1_g, ln1_b, attn_out_b, ln2_g, ln2_b, mlp_proj_b]
    vec_pack = jnp.stack([
        jnp.zeros((D,), jnp.float32),                    # proj_coop_pre bias
        jnp.zeros((D,), jnp.float32),                    # proj_vpt_pre bias
        jnp.ones((D,), jnp.float32),                     # ln_1 gamma
        jnp.zeros((D,), jnp.float32),                    # ln_1 beta
        jnp.zeros((D,), jnp.float32),                    # attn out_proj bias
        jnp.ones((D,), jnp.float32),                     # ln_2 gamma
        jnp.zeros((D,), jnp.float32),                    # ln_2 beta
        jnp.zeros((D,), jnp.float32),                    # mlp c_proj bias
    ], axis=0)

    # Additive attention mask: prompt_seq is (L, N=Lp, D), rows flattened
    # L-major (i = l*N + n); attention only mixes tokens with equal batch n.
    idx = jnp.arange(LN)
    valid = (idx[:, None] % Lp) == (idx[None, :] % Lp)
    attn_bias = jnp.where(valid, 0.0, -1e30).astype(jnp.float32)

    params = {
        "dim_transformer": D,
        "coop_embeddings": nrm((n_coop, prompt_len, coop_dim)),
        "vpt_embeddings": nrm((n_vpt, prompt_len, vpt_dim)),
        "proj_coop_pre_wt": w_t(D, coop_dim),            # (coop_dim, D)
        "proj_vpt_pre_wt": w_t(D, vpt_dim),              # (vpt_dim, D)
        # proj_coop_post / proj_vpt_post stacked side-by-side (lane-denser out)
        "proj_post_wt": jnp.concatenate([proj_coop_post_wt, proj_vpt_post_wt],
                                        axis=1),         # (D, coop_dim+vpt_dim)
        "proj_post_b": jnp.zeros((1, coop_dim + vpt_dim), jnp.float32),
        "prompt_vec_pack": vec_pack,
        "tf_qkv_wt": w_t(3 * D, D),                      # (D, 3D)
        "tf_qkv_b": jnp.zeros((1, 3 * D), jnp.float32),
        "tf_out_wt": w_t(D, D),                          # (D, D)
        "tf_fc_wt": w_t(4 * D, D),                       # (D, 4D)
        "tf_fc_b": jnp.zeros((1, 4 * D), jnp.float32),
        "tf_proj_wt": w_t(D, 4 * D),                     # (4D, D)
        "attn_bias": attn_bias,
        "text_enc": {
            "w_text_t": w_t(embed_dim, coop_dim),
            "b_text": jnp.zeros((1, embed_dim), jnp.float32),
        },
        "img_enc": {
            "patch": patch,
            "w_patch_t": w_t(vpt_dim, img_channels * patch * patch),
            "b_patch": jnp.zeros((1, vpt_dim), jnp.float32),
            "w_img_t": w_t(embed_dim, vpt_dim),
            "b_img": jnp.zeros((1, embed_dim), jnp.float32),
        },
    }
    # `classes` argument of forward: class embedding matrix
    classes = nrm((num_classes, coop_dim))
    return params, classes


if __name__ == "__main__":
    key = jax.random.PRNGKey(0)
    kp, kx = jax.random.split(key)
    params, classes = make_params(kp)

    # x in NCHW, consistent with the PyTorch image encoder input
    x = jax.random.normal(kx, (2, 4, 16, 16), dtype=jnp.float32)

    text_out, visual_out = upt_forward(params, x, classes)
    jax.block_until_ready((text_out, visual_out))

    assert text_out.shape == (4, 32)
    assert visual_out.shape == (2, 32)
    assert jnp.all(jnp.isfinite(text_out)) and jnp.all(jnp.isfinite(visual_out))
    print("KERNEL_OK")
</pallas_src>

<mosaic_0001>
module attributes {stable_mosaic.version = 11 : i64} {
  func.func @_prompt_kernel(%arg0: i32, %arg1: memref<16x32xf32, #tpu.memory_space<vmem>>, %arg2: memref<16x32xf32, #tpu.memory_space<vmem>>, %arg3: memref<32x32xbf16, #tpu.memory_space<vmem>>, %arg4: memref<32x32xbf16, #tpu.memory_space<vmem>>, %arg5: memref<8x32xf32, #tpu.memory_space<vmem>>, %arg6: memref<32x96xbf16, #tpu.memory_space<vmem>>, %arg7: memref<1x96xf32, #tpu.memory_space<vmem>>, %arg8: memref<32x32xbf16, #tpu.memory_space<vmem>>, %arg9: memref<32x128xbf16, #tpu.memory_space<vmem>>, %arg10: memref<1x128xf32, #tpu.memory_space<vmem>>, %arg11: memref<128x32xbf16, #tpu.memory_space<vmem>>, %arg12: memref<32x32xf32, #tpu.memory_space<vmem>>, %arg13: memref<32x32xf32, #tpu.memory_space<vmem>>) attributes {dimension_semantics = [#tpu.dimension_semantics<arbitrary>], iteration_bounds = array<i64: 1>, scalar_prefetch = 0 : i64, scratch_operands = 0 : i64, tpu.core_type = #tpu.core_type<tc>, window_params = [{pipeline_mode = #tpu.pipeline_mode<synchronous>, transform_indices = @transform_0, window_bounds = array<i64: 16, 32>}, {pipeline_mode = #tpu.pipeline_mode<synchronous>, transform_indices = @transform_1, window_bounds = array<i64: 16, 32>}, {pipeline_mode = #tpu.pipeline_mode<synchronous>, transform_indices = @transform_2, window_bounds = array<i64: 32, 32>}, {pipeline_mode = #tpu.pipeline_mode<synchronous>, transform_indices = @transform_3, window_bounds = array<i64: 32, 32>}, {pipeline_mode = #tpu.pipeline_mode<synchronous>, transform_indices = @transform_4, window_bounds = array<i64: 8, 32>}, {pipeline_mode = #tpu.pipeline_mode<synchronous>, transform_indices = @transform_5, window_bounds = array<i64: 32, 96>}, {pipeline_mode = #tpu.pipeline_mode<synchronous>, transform_indices = @transform_6, window_bounds = array<i64: 1, 96>}, {pipeline_mode = #tpu.pipeline_mode<synchronous>, transform_indices = @transform_7, window_bounds = array<i64: 32, 32>}, {pipeline_mode = #tpu.pipeline_mode<synchronous>, transform_indices = @transform_8, window_bounds = array<i64: 32, 128>}, {pipeline_mode = #tpu.pipeline_mode<synchronous>, transform_indices = @transform_9, window_bounds = array<i64: 1, 128>}, {pipeline_mode = #tpu.pipeline_mode<synchronous>, transform_indices = @transform_10, window_bounds = array<i64: 128, 32>}, {pipeline_mode = #tpu.pipeline_mode<synchronous>, transform_indices = @transform_11, window_bounds = array<i64: 32, 32>}, {pipeline_mode = #tpu.pipeline_mode<synchronous>, transform_indices = @transform_12, window_bounds = array<i64: 32, 32>}]} {
    %c0 = arith.constant 0 : index
    %c0_0 = arith.constant 0 : index
    %0 = vector.load %arg5[%c0, %c0_0] : memref<8x32xf32, #tpu.memory_space<vmem>>, vector<8x32xf32>
    %1 = vector.extract_strided_slice %0 {offsets = [0, 0], sizes = [1, 32], strides = [1, 1]} : vector<8x32xf32> to vector<1x32xf32>
    %2 = vector.extract_strided_slice %0 {offsets = [1, 0], sizes = [1, 32], strides = [1, 1]} : vector<8x32xf32> to vector<1x32xf32>
    %3 = vector.extract_strided_slice %0 {offsets = [2, 0], sizes = [1, 32], strides = [1, 1]} : vector<8x32xf32> to vector<1x32xf32>
    %4 = vector.extract_strided_slice %0 {offsets = [3, 0], sizes = [1, 32], strides = [1, 1]} : vector<8x32xf32> to vector<1x32xf32>
    %5 = vector.extract_strided_slice %0 {offsets = [4, 0], sizes = [1, 32], strides = [1, 1]} : vector<8x32xf32> to vector<1x32xf32>
    %6 = vector.extract_strided_slice %0 {offsets = [5, 0], sizes = [1, 32], strides = [1, 1]} : vector<8x32xf32> to vector<1x32xf32>
    %7 = vector.extract_strided_slice %0 {offsets = [6, 0], sizes = [1, 32], strides = [1, 1]} : vector<8x32xf32> to vector<1x32xf32>
    %8 = vector.extract_strided_slice %0 {offsets = [7, 0], sizes = [1, 32], strides = [1, 1]} : vector<8x32xf32> to vector<1x32xf32>
    %c0_1 = arith.constant 0 : index
    %c0_2 = arith.constant 0 : index
    %9 = vector.load %arg1[%c0_1, %c0_2] : memref<16x32xf32, #tpu.memory_space<vmem>>, vector<16x32xf32>
    %c0_3 = arith.constant 0 : index
    %c0_4 = arith.constant 0 : index
    %10 = vector.load %arg3[%c0_3, %c0_4] : memref<32x32xbf16, #tpu.memory_space<vmem>>, vector<32x32xbf16>
    %11 = arith.truncf %9 : vector<16x32xf32> to vector<16x32xbf16>
    %cst = arith.constant dense<0.000000e+00> : vector<16x32xf32>
    %12 = tpu.matmul %11, %10, %cst {dimension_numbers = #tpu.dot_dimension_numbers<[1], [0], [0], [1], [0, 0, 1, 1], [], []>} : vector<16x32xbf16>, vector<32x32xbf16>, vector<16x32xf32> -> vector<16x32xf32>
    %13 = vector.broadcast %1 : vector<1x32xf32> to vector<16x32xf32>
    %14 = arith.addf %12, %13 : vector<16x32xf32>
    %c0_5 = arith.constant 0 : index
    %c0_6 = arith.constant 0 : index
    %15 = vector.load %arg2[%c0_5, %c0_6] : memref<16x32xf32, #tpu.memory_space<vmem>>, vector<16x32xf32>
    %c0_7 = arith.constant 0 : index
    %c0_8 = arith.constant 0 : index
    %16 = vector.load %arg4[%c0_7, %c0_8] : memref<32x32xbf16, #tpu.memory_space<vmem>>, vector<32x32xbf16>
    %17 = arith.truncf %15 : vector<16x32xf32> to vector<16x32xbf16>
    %cst_9 = arith.constant dense<0.000000e+00> : vector<16x32xf32>
    %18 = tpu.matmul %17, %16, %cst_9 {dimension_numbers = #tpu.dot_dimension_numbers<[1], [0], [0], [1], [0, 0, 1, 1], [], []>} : vector<16x32xbf16>, vector<32x32xbf16>, vector<16x32xf32> -> vector<16x32xf32>
    %19 = vector.broadcast %2 : vector<1x32xf32> to vector<16x32xf32>
    %20 = arith.addf %18, %19 : vector<16x32xf32>
    %21 = tpu.concatenate %14, %20 in 0 : vector<16x32xf32>, vector<16x32xf32> -> vector<32x32xf32>
    %cst_10 = arith.constant dense<0.000000e+00> : vector<32xf32>
    %22 = vector.multi_reduction <add>, %21, %cst_10 [1] : vector<32x32xf32> to vector<32xf32>
    %23 = vector.shape_cast %22 : vector<32xf32> to vector<32x1xf32>
    %cst_11 = arith.constant 3.200000e+01 : f32
    %24 = vector.broadcast %cst_11 : f32 to vector<32x1xf32>
    %25 = arith.divf %23, %24 : vector<32x1xf32>
    %26 = vector.broadcast %25 : vector<32x1xf32> to vector<32x32xf32>
    %27 = arith.subf %21, %26 : vector<32x32xf32>
    %28 = arith.mulf %27, %27 : vector<32x32xf32>
    %cst_12 = arith.constant dense<0.000000e+00> : vector<32xf32>
    %29 = vector.multi_reduction <add>, %28, %cst_12 [1] : vector<32x32xf32> to vector<32xf32>
    %30 = vector.shape_cast %29 : vector<32xf32> to vector<32x1xf32>
    %cst_13 = arith.constant 3.200000e+01 : f32
    %31 = vector.broadcast %cst_13 : f32 to vector<32x1xf32>
    %32 = arith.divf %30, %31 : vector<32x1xf32>
    %33 = vector.broadcast %25 : vector<32x1xf32> to vector<32x32xf32>
    %34 = arith.subf %21, %33 : vector<32x32xf32>
    %cst_14 = arith.constant 9.99999974E-6 : f32
    %35 = vector.broadcast %cst_14 : f32 to vector<32x1xf32>
    %36 = arith.addf %32, %35 : vector<32x1xf32>
    %37 = math.rsqrt %36 : vector<32x1xf32>
    %38 = vector.broadcast %37 : vector<32x1xf32> to vector<32x32xf32>
    %39 = arith.mulf %34, %38 : vector<32x32xf32>
    %40 = vector.broadcast %3 : vector<1x32xf32> to vector<32x32xf32>
    %41 = arith.mulf %39, %40 : vector<32x32xf32>
    %42 = vector.broadcast %4 : vector<1x32xf32> to vector<32x32xf32>
    %43 = arith.addf %41, %42 : vector<32x32xf32>
    %c0_15 = arith.constant 0 : index
    %c0_16 = arith.constant 0 : index
    %44 = vector.load %arg6[%c0_15, %c0_16] : memref<32x96xbf16, #tpu.memory_space<vmem>>, vector<32x96xbf16>
    %45 = arith.truncf %43 : vector<32x32xf32> to vector<32x32xbf16>
    %cst_17 = arith.constant dense<0.000000e+00> : vector<32x96xf32>
    %46 = tpu.matmul %45, %44, %cst_17 {dimension_numbers = #tpu.dot_dimension_numbers<[1], [0], [0], [1], [0, 0, 1, 1], [], []>} : vector<32x32xbf16>, vector<32x96xbf16>, vector<32x96xf32> -> vector<32x96xf32>
    %c0_18 = arith.constant 0 : index
    %c0_19 = arith.constant 0 : index
    %47 = vector.load %arg7[%c0_18, %c0_19] : memref<1x96xf32, #tpu.memory_space<vmem>>, vector<1x96xf32>
    %48 = vector.broadcast %47 : vector<1x96xf32> to vector<32x96xf32>
    %49 = arith.addf %46, %48 : vector<32x96xf32>
    %50 = vector.extract_strided_slice %49 {offsets = [0, 0], sizes = [32, 32], strides = [1, 1]} : vector<32x96xf32> to vector<32x32xf32>
    %cst_20 = arith.constant 0.176776692 : f32
    %51 = vector.broadcast %cst_20 : f32 to vector<32x32xf32>
    %52 = arith.mulf %50, %51 : vector<32x32xf32>
    %53 = vector.extract_strided_slice %49 {offsets = [0, 32], sizes = [32, 32], strides = [1, 1]} : vector<32x96xf32> to vector<32x32xf32>
    %54 = vector.extract_strided_slice %49 {offsets = [0, 64], sizes = [32, 32], strides = [1, 1]} : vector<32x96xf32> to vector<32x32xf32>
    %55 = arith.truncf %52 : vector<32x32xf32> to vector<32x32xbf16>
    %56 = arith.truncf %53 : vector<32x32xf32> to vector<32x32xbf16>
    %cst_21 = arith.constant dense<0.000000e+00> : vector<32x32xf32>
    %57 = tpu.matmul %55, %56, %cst_21 {dimension_numbers = #tpu.dot_dimension_numbers<[1], [1], [0], [0], [0, 0, 1, 0], [], []>} : vector<32x32xbf16>, vector<32x32xbf16>, vector<32x32xf32> -> vector<32x32xf32>
    %c0_22 = arith.constant 0 : index
    %c0_23 = arith.constant 0 : index
    %58 = vector.load %arg12[%c0_22, %c0_23] : memref<32x32xf32, #tpu.memory_space<vmem>>, vector<32x32xf32>
    %59 = arith.addf %57, %58 : vector<32x32xf32>
    %cst_24 = arith.constant dense<0xFF800000> : vector<32xf32>
    %60 = vector.multi_reduction <maximumf>, %59, %cst_24 [1] : vector<32x32xf32> to vector<32xf32>
    %61 = vector.shape_cast %60 : vector<32xf32> to vector<32x1xf32>
    %62 = vector.broadcast %61 : vector<32x1xf32> to vector<32x32xf32>
    %63 = arith.subf %59, %62 : vector<32x32xf32>
    %64 = math.exp %63 : vector<32x32xf32>
    %cst_25 = arith.constant dense<0.000000e+00> : vector<32xf32>
    %65 = vector.multi_reduction <add>, %64, %cst_25 [1] : vector<32x32xf32> to vector<32xf32>
    %66 = vector.shape_cast %65 : vector<32xf32> to vector<32x1xf32>
    %67 = tpu.reciprocal %66 {approx = true} : vector<32x1xf32> -> vector<32x1xf32>
    %68 = vector.broadcast %67 : vector<32x1xf32> to vector<32x32xf32>
    %69 = arith.mulf %64, %68 : vector<32x32xf32>
    %70 = arith.truncf %69 : vector<32x32xf32> to vector<32x32xbf16>
    %71 = arith.truncf %54 : vector<32x32xf32> to vector<32x32xbf16>
    %cst_26 = arith.constant dense<0.000000e+00> : vector<32x32xf32>
    %72 = tpu.matmul %70, %71, %cst_26 {dimension_numbers = #tpu.dot_dimension_numbers<[1], [0], [0], [1], [0, 0, 1, 1], [], []>} : vector<32x32xbf16>, vector<32x32xbf16>, vector<32x32xf32> -> vector<32x32xf32>
    %c0_27 = arith.constant 0 : index
    %c0_28 = arith.constant 0 : index
    %73 = vector.load %arg8[%c0_27, %c0_28] : memref<32x32xbf16, #tpu.memory_space<vmem>>, vector<32x32xbf16>
    %74 = arith.truncf %72 : vector<32x32xf32> to vector<32x32xbf16>
    %cst_29 = arith.constant dense<0.000000e+00> : vector<32x32xf32>
    %75 = tpu.matmul %74, %73, %cst_29 {dimension_numbers = #tpu.dot_dimension_numbers<[1], [0], [0], [1], [0, 0, 1, 1], [], []>} : vector<32x32xbf16>, vector<32x32xbf16>, vector<32x32xf32> -> vector<32x32xf32>
    %76 = arith.addf %21, %75 : vector<32x32xf32>
    %77 = vector.broadcast %5 : vector<1x32xf32> to vector<32x32xf32>
    %78 = arith.addf %76, %77 : vector<32x32xf32>
    %cst_30 = arith.constant dense<0.000000e+00> : vector<32xf32>
    %79 = vector.multi_reduction <add>, %78, %cst_30 [1] : vector<32x32xf32> to vector<32xf32>
    %80 = vector.shape_cast %79 : vector<32xf32> to vector<32x1xf32>
    %cst_31 = arith.constant 3.200000e+01 : f32
    %81 = vector.broadcast %cst_31 : f32 to vector<32x1xf32>
    %82 = arith.divf %80, %81 : vector<32x1xf32>
    %83 = vector.broadcast %82 : vector<32x1xf32> to vector<32x32xf32>
    %84 = arith.subf %78, %83 : vector<32x32xf32>
    %85 = arith.mulf %84, %84 : vector<32x32xf32>
    %cst_32 = arith.constant dense<0.000000e+00> : vector<32xf32>
    %86 = vector.multi_reduction <add>, %85, %cst_32 [1] : vector<32x32xf32> to vector<32xf32>
    %87 = vector.shape_cast %86 : vector<32xf32> to vector<32x1xf32>
    %cst_33 = arith.constant 3.200000e+01 : f32
    %88 = vector.broadcast %cst_33 : f32 to vector<32x1xf32>
    %89 = arith.divf %87, %88 : vector<32x1xf32>
    %90 = vector.broadcast %82 : vector<32x1xf32> to vector<32x32xf32>
    %91 = arith.subf %78, %90 : vector<32x32xf32>
    %cst_34 = arith.constant 9.99999974E-6 : f32
    %92 = vector.broadcast %cst_34 : f32 to vector<32x1xf32>
    %93 = arith.addf %89, %92 : vector<32x1xf32>
    %94 = math.rsqrt %93 : vector<32x1xf32>
    %95 = vector.broadcast %94 : vector<32x1xf32> to vector<32x32xf32>
    %96 = arith.mulf %91, %95 : vector<32x32xf32>
    %97 = vector.broadcast %6 : vector<1x32xf32> to vector<32x32xf32>
    %98 = arith.mulf %96, %97 : vector<32x32xf32>
    %99 = vector.broadcast %7 : vector<1x32xf32> to vector<32x32xf32>
    %100 = arith.addf %98, %99 : vector<32x32xf32>
    %c0_35 = arith.constant 0 : index
    %c0_36 = arith.constant 0 : index
    %101 = vector.load %arg9[%c0_35, %c0_36] : memref<32x128xbf16, #tpu.memory_space<vmem>>, vector<32x128xbf16>
    %102 = arith.truncf %100 : vector<32x32xf32> to vector<32x32xbf16>
    %cst_37 = arith.constant dense<0.000000e+00> : vector<32x128xf32>
    %103 = tpu.matmul %102, %101, %cst_37 {dimension_numbers = #tpu.dot_dimension_numbers<[1], [0], [0], [1], [0, 0, 1, 1], [], []>} : vector<32x32xbf16>, vector<32x128xbf16>, vector<32x128xf32> -> vector<32x128xf32>
    %c0_38 = arith.constant 0 : index
    %c0_39 = arith.constant 0 : index
    %104 = vector.load %arg10[%c0_38, %c0_39] : memref<1x128xf32, #tpu.memory_space<vmem>>, vector<1x128xf32>
    %105 = vector.broadcast %104 : vector<1x128xf32> to vector<32x128xf32>
    %106 = arith.addf %103, %105 : vector<32x128xf32>
    %cst_40 = arith.constant 1.702000e+00 : f32
    %107 = vector.broadcast %cst_40 : f32 to vector<32x128xf32>
    %108 = arith.mulf %107, %106 : vector<32x128xf32>
    %109 = arith.negf %108 : vector<32x128xf32>
    %110 = math.exp %109 : vector<32x128xf32>
    %cst_41 = arith.constant 1.000000e+00 : f32
    %111 = vector.broadcast %cst_41 : f32 to vector<32x128xf32>
    %112 = arith.addf %111, %110 : vector<32x128xf32>
    %113 = arith.divf %111, %112 : vector<32x128xf32>
    %114 = arith.mulf %106, %113 : vector<32x128xf32>
    %c0_42 = arith.constant 0 : index
    %c0_43 = arith.constant 0 : index
    %115 = vector.load %arg11[%c0_42, %c0_43] : memref<128x32xbf16, #tpu.memory_space<vmem>>, vector<128x32xbf16>
    %116 = arith.truncf %114 : vector<32x128xf32> to vector<32x128xbf16>
    %cst_44 = arith.constant dense<0.000000e+00> : vector<32x32xf32>
    %117 = tpu.matmul %116, %115, %cst_44 {dimension_numbers = #tpu.dot_dimension_numbers<[1], [0], [0], [1], [0, 0, 1, 1], [], []>} : vector<32x128xbf16>, vector<128x32xbf16>, vector<32x32xf32> -> vector<32x32xf32>
    %118 = arith.addf %78, %117 : vector<32x32xf32>
    %119 = vector.broadcast %8 : vector<1x32xf32> to vector<32x32xf32>
    %120 = arith.addf %118, %119 : vector<32x32xf32>
    %c0_45 = arith.constant 0 : index
    %c0_46 = arith.constant 0 : index
    %121 = vector.load %arg13[%c0_45, %c0_46] : memref<32x32xf32, #tpu.memory_space<vmem>>, vector<32x32xf32>
    tpu.vector_store %arg13[%c0_45, %c0_46], %120 {strides = array<i32>} : memref<32x32xf32, #tpu.memory_space<vmem>>, vector<32x32xf32>,
    return
  }
  func.func @transform_0(%arg0: i32) -> (i32, i32) {
    %c0_i32 = arith.constant 0 : i32
    %c0_i32_0 = arith.constant 0 : i32
    %c0_i32_1 = arith.constant 0 : i32
    return %c0_i32, %c0_i32_0 : i32, i32
  }
  func.func @transform_1(%arg0: i32) -> (i32, i32) {
    %c0_i32 = arith.constant 0 : i32
    %c0_i32_0 = arith.constant 0 : i32
    %c0_i32_1 = arith.constant 0 : i32
    return %c0_i32, %c0_i32_0 : i32, i32
  }
  func.func @transform_2(%arg0: i32) -> (i32, i32) {
    %c0_i32 = arith.constant 0 : i32
    %c0_i32_0 = arith.constant 0 : i32
    %c0_i32_1 = arith.constant 0 : i32
    return %c0_i32, %c0_i32_0 : i32, i32
  }
  func.func @transform_3(%arg0: i32) -> (i32, i32) {
    %c0_i32 = arith.constant 0 : i32
    %c0_i32_0 = arith.constant 0 : i32
    %c0_i32_1 = arith.constant 0 : i32
    return %c0_i32, %c0_i32_0 : i32, i32
  }
  func.func @transform_4(%arg0: i32) -> (i32, i32) {
    %c0_i32 = arith.constant 0 : i32
    %c0_i32_0 = arith.constant 0 : i32
    %c0_i32_1 = arith.constant 0 : i32
    return %c0_i32, %c0_i32_0 : i32, i32
  }
  func.func @transform_5(%arg0: i32) -> (i32, i32) {
    %c0_i32 = arith.constant 0 : i32
    %c0_i32_0 = arith.constant 0 : i32
    %c0_i32_1 = arith.constant 0 : i32
    return %c0_i32, %c0_i32_0 : i32, i32
  }
  func.func @transform_6(%arg0: i32) -> (i32, i32) {
    %c0_i32 = arith.constant 0 : i32
    %c0_i32_0 = arith.constant 0 : i32
    %c0_i32_1 = arith.constant 0 : i32
    return %c0_i32, %c0_i32_0 : i32, i32
  }
  func.func @transform_7(%arg0: i32) -> (i32, i32) {
    %c0_i32 = arith.constant 0 : i32
    %c0_i32_0 = arith.constant 0 : i32
    %c0_i32_1 = arith.constant 0 : i32
    return %c0_i32, %c0_i32_0 : i32, i32
  }
  func.func @transform_8(%arg0: i32) -> (i32, i32) {
    %c0_i32 = arith.constant 0 : i32
    %c0_i32_0 = arith.constant 0 : i32
    %c0_i32_1 = arith.constant 0 : i32
    return %c0_i32, %c0_i32_0 : i32, i32
  }
  func.func @transform_9(%arg0: i32) -> (i32, i32) {
    %c0_i32 = arith.constant 0 : i32
    %c0_i32_0 = arith.constant 0 : i32
    %c0_i32_1 = arith.constant 0 : i32
    return %c0_i32, %c0_i32_0 : i32, i32
  }
  func.func @transform_10(%arg0: i32) -> (i32, i32) {
    %c0_i32 = arith.constant 0 : i32
    %c0_i32_0 = arith.constant 0 : i32
    %c0_i32_1 = arith.constant 0 : i32
    return %c0_i32, %c0_i32_0 : i32, i32
  }
  func.func @transform_11(%arg0: i32) -> (i32, i32) {
    %c0_i32 = arith.constant 0 : i32
    %c0_i32_0 = arith.constant 0 : i32
    %c0_i32_1 = arith.constant 0 : i32
    return %c0_i32, %c0_i32_0 : i32, i32
  }
  func.func @transform_12(%arg0: i32) -> (i32, i32) {
    %c0_i32 = arith.constant 0 : i32
    %c0_i32_0 = arith.constant 0 : i32
    %c0_i32_1 = arith.constant 0 : i32
    return %c0_i32, %c0_i32_0 : i32, i32
  }
}

</mosaic_0001>

<llo_original>
// kernel: tpu_custom_call.1
$region0: #{tpu_custom_call.1}
  #allocation0 [shape = 'u32[]', space=smem, size = 0x4, offset = 0x4, fixed_abs, tag = 'smem constant byte address 0x4 - core index']
  #allocation1 [shape = 'u32[144,128]{1,0:T(1,128)}', space=vmem, size = 0x12000, scoped, tag = 'internal scratch']
  %s0 = inlined_call_operand.vmem [shape: f32[16,32], index: 0, kind: input, shape index: {}]
  %s1 = inlined_call_operand.vmem [shape: f32[16,32], index: 1, kind: input, shape index: {}]
  %s2 = inlined_call_operand.vmem [shape: bf16[32,32], index: 2, kind: input, shape index: {}]
  %s3 = inlined_call_operand.hbm [shape: bf16[32,32], index: 3, kind: input, shape index: {}]
  %s4 = inlined_call_operand.vmem [shape: f32[8,32], index: 4, kind: input, shape index: {}]
  %s5 = inlined_call_operand.hbm [shape: bf16[32,96], index: 5, kind: input, shape index: {}]
  %s6 = inlined_call_operand.vmem [shape: f32[1,96], index: 6, kind: input, shape index: {}]
  %s7 = inlined_call_operand.hbm [shape: bf16[32,32], index: 7, kind: input, shape index: {}]
  %s8 = inlined_call_operand.hbm [shape: bf16[32,128], index: 8, kind: input, shape index: {}]
  %s9 = inlined_call_operand.vmem [shape: f32[1,128], index: 9, kind: input, shape index: {}]
  %s10 = inlined_call_operand.vmem [shape: bf16[128,32], index: 10, kind: input, shape index: {}]
  %s11 = inlined_call_operand.vmem [shape: f32[32,32], index: 11, kind: input, shape index: {}]
  %s12 = inlined_call_operand.hbm [shape: f32[32,32], index: 12, kind: output, shape index: {}]
  %s13 = sld [smem:[#allocation0]]
  $region74: #{tpu_custom_call.1} parent=0
    _
  %s15 = ssub.s32 1, %s13
  %s16 = scalar_select 0, %s15, %s13
  $region1: #{tpu_custom_call.1} parent=0
    #allocation2 [shape = 'u8[8192]{0}', space=vmem, size = 0x2000, scoped, tag = 'input window, operand 3, single buffered']
    #allocation3 [shape = 's32[1]{0}', space=sflag, size = 0x4, scoped, tag = 'scoped memory for tpu_custom_call.1']
    #allocation4 [shape = 's32[1]{0}', space=sflag, size = 0x4, scoped, tag = 'scoped memory for tpu_custom_call.1']
    #allocation5 [shape = 'u8[8192]{0}', space=vmem, size = 0x2000, scoped, tag = 'input window, operand 5, single buffered']
    #allocation6 [shape = 's32[1]{0}', space=sflag, size = 0x4, scoped, tag = 'scoped memory for tpu_custom_call.1']
    #allocation7 [shape = 'u8[8192]{0}', space=vmem, size = 0x2000, scoped, tag = 'input window, operand 7, single buffered']
    #allocation8 [shape = 'u8[8192]{0}', space=vmem, size = 0x2000, scoped, tag = 'input window, operand 8, single buffered']
    #allocation9 [shape = 's32[1]{0}', space=sflag, size = 0x4, scoped, tag = 'scoped memory for tpu_custom_call.1']
    #allocation10 [shape = 'u8[16384]{0}', space=vmem, size = 0x4000, scoped, tag = 'output window, operand 0, single buffered']
    %17 = vsyncpa [#allocation3], 0
    %18 = vsyncpa [#allocation6], 0
    %19 = vsyncpa [#allocation9], 0
    %20 = vsyncpa [#allocation4], 0
    // Predicated region
    $region2: #{tpu_custom_call.1} parent=1 // pred_check
      _
    $region3: #{tpu_custom_call.1} parent=1 // pred_check_branch
      %22 = sbr.rel (0) target = $region5
    $region4: #{tpu_custom_call.1} parent=1 // pred_region
      _
    $region5: #{tpu_custom_call.1} parent=1 // pred_fallthru
      _
    // Predicated region
    $region6: #{tpu_custom_call.1} parent=1 // pred_check
      _
    $region7: #{tpu_custom_call.1} parent=1 // pred_check_branch
      %24 = sbr.rel (0) target = $region9
    $region8: #{tpu_custom_call.1} parent=1 // pred_region
      _
    $region9: #{tpu_custom_call.1} parent=1 // pred_fallthru
      _
    // Predicated region
    $region10: #{tpu_custom_call.1} parent=1 // pred_check
      _
    $region11: #{tpu_custom_call.1} parent=1 // pred_check_branch
      %26 = sbr.rel (0) target = $region13
    $region12: #{tpu_custom_call.1} parent=1 // pred_region
      _
    $region13: #{tpu_custom_call.1} parent=1 // pred_fallthru
      _
    // Predicated region
    $region14: #{tpu_custom_call.1} parent=1 // pred_check
      _
    $region15: #{tpu_custom_call.1} parent=1 // pred_check_branch
      %28 = sbr.rel (0) target = $region17
    $region16: #{tpu_custom_call.1} parent=1 // pred_region
      %s30 = ssub.s32 256, 256
      %31 = vsyncadd [#allocation3], %s30
      %s32 = sshll.u32 [#allocation2], 4
      %s33 = int_to_ptr.vmem [resolvable:$true] %s32
      %38 = dma.hbm_to_vmem [thread:$0]  %s3, 256, %s33, [#allocation3], 64, 64, 4
    $region17: #{tpu_custom_call.1} parent=1 // pred_fallthru
      _
    // Predicated region
    $region18: #{tpu_custom_call.1} parent=1 // pred_check
      _
    $region19: #{tpu_custom_call.1} parent=1 // pred_check_branch
      %40 = sbr.rel (0) target = $region21
    $region20: #{tpu_custom_call.1} parent=1 // pred_region
      _
    $region21: #{tpu_custom_call.1} parent=1 // pred_fallthru
      _
    // Predicated region
    $region22: #{tpu_custom_call.1} parent=1 // pred_check
      _
    $region23: #{tpu_custom_call.1} parent=1 // pred_check_branch
      %42 = sbr.rel (0) target = $region25
    $region24: #{tpu_custom_call.1} parent=1 // pred_region
      %s44 = ssub.s32 256, 256
      %45 = vsyncadd [#allocation6], %s44
      %s46 = sshll.u32 [#allocation5], 4
      %s47 = int_to_ptr.vmem [resolvable:$true] %s46
      %52 = dma.hbm_to_vmem [thread:$0]  %s5, 256, %s47, [#allocation6], 64, 64, 4
    $region25: #{tpu_custom_call.1} parent=1 // pred_fallthru
      _
    // Predicated region
    $region26: #{tpu_custom_call.1} parent=1 // pred_check
      _
    $region27: #{tpu_custom_call.1} parent=1 // pred_check_branch
      %54 = sbr.rel (0) target = $region29
    $region28: #{tpu_custom_call.1} parent=1 // pred_region
      _
    $region29: #{tpu_custom_call.1} parent=1 // pred_fallthru
      _
    // Predicated region
    $region30: #{tpu_custom_call.1} parent=1 // pred_check
      _
    $region31: #{tpu_custom_call.1} parent=1 // pred_check_branch
      %56 = sbr.rel (0) target = $region33
    $region32: #{tpu_custom_call.1} parent=1 // pred_region
      %s58 = ssub.s32 256, 256
      %59 = vsyncadd [#allocation6], %s58
      %s60 = sshll.u32 [#allocation7], 4
      %s61 = int_to_ptr.vmem [resolvable:$true] %s60
      %66 = dma.hbm_to_vmem [thread:$0]  %s7, 256, %s61, [#allocation6], 64, 64, 4
    $region33: #{tpu_custom_call.1} parent=1 // pred_fallthru
      _
    // Predicated region
    $region34: #{tpu_custom_call.1} parent=1 // pred_check
      _
    $region35: #{tpu_custom_call.1} parent=1 // pred_check_branch
      %68 = sbr.rel (0) target = $region37
    $region36: #{tpu_custom_call.1} parent=1 // pred_region
      %s70 = ssub.s32 256, 256
      %71 = vsyncadd [#allocation9], %s70
      %s72 = sshll.u32 [#allocation8], 4
      %s73 = int_to_ptr.vmem [resolvable:$true] %s72
      %78 = dma.hbm_to_vmem [thread:$0]  %s8, 256, %s73, [#allocation9], 64, 64, 4
    $region37: #{tpu_custom_call.1} parent=1 // pred_fallthru
      _
    // Predicated region
    $region38: #{tpu_custom_call.1} parent=1 // pred_check
      _
    $region39: #{tpu_custom_call.1} parent=1 // pred_check_branch
      %80 = sbr.rel (0) target = $region41
    $region40: #{tpu_custom_call.1} parent=1 // pred_region
      _
    $region41: #{tpu_custom_call.1} parent=1 // pred_fallthru
      _
    // Predicated region
    $region42: #{tpu_custom_call.1} parent=1 // pred_check
      _
    $region43: #{tpu_custom_call.1} parent=1 // pred_check_branch
      %82 = sbr.rel (0) target = $region45
    $region44: #{tpu_custom_call.1} parent=1 // pred_region
      _
    $region45: #{tpu_custom_call.1} parent=1 // pred_fallthru
      _
    // Predicated region
    $region46: #{tpu_custom_call.1} parent=1 // pred_check
      _
    $region47: #{tpu_custom_call.1} parent=1 // pred_check_branch
      %84 = sbr.rel (0) target = $region49
    $region48: #{tpu_custom_call.1} parent=1 // pred_region
      _
    $region49: #{tpu_custom_call.1} parent=1 // pred_fallthru
      _
    // Predicated region
    $region50: #{tpu_custom_call.1} parent=1 // pred_check
      _
    $region51: #{tpu_custom_call.1} parent=1 // pred_check_branch
      %86 = sbr.rel (0) target = $region53
    $region52: #{tpu_custom_call.1} parent=1 // pred_region
      %87 = dma.done [#allocation3], 256
    $region53: #{tpu_custom_call.1} parent=1 // pred_fallthru
      _
    // Predicated region
    $region54: #{tpu_custom_call.1} parent=1 // pred_check
      _
    $region55: #{tpu_custom_call.1} parent=1 // pred_check_branch
      %89 = sbr.rel (0) target = $region57
    $region56: #{tpu_custom_call.1} parent=1 // pred_region
      %90 = dma.done [#allocation6], 256
    $region57: #{tpu_custom_call.1} parent=1 // pred_fallthru
      _
    // Predicated region
    $region58: #{tpu_custom_call.1} parent=1 // pred_check
      _
    $region59: #{tpu_custom_call.1} parent=1 // pred_check_branch
      %92 = sbr.rel (0) target = $region61
    $region60: #{tpu_custom_call.1} parent=1 // pred_region
      %93 = dma.done [#allocation6], 256
    $region61: #{tpu_custom_call.1} parent=1 // pred_fallthru
      _
    // Predicated region
    $region62: #{tpu_custom_call.1} parent=1 // pred_check
      _
    $region63: #{tpu_custom_call.1} parent=1 // pred_check_branch
      %95 = sbr.rel (0) target = $region65
    $region64: #{tpu_custom_call.1} parent=1 // pred_region
      %96 = dma.done [#allocation9], 256
    $region65: #{tpu_custom_call.1} parent=1 // pred_fallthru
      _
    %v98 = vld [vmem:[%s4] sm:$0xff]
    %v99 = vld [vmem:[%s0] sm:$0xff]
    %v100 = vld [vmem:[%s0 + $0x8] sm:$0xff]
    %v101 = vld [vmem:[%s2] sm:$0xf]
    %v102 = vld [vmem:[%s2 + $0x4] sm:$0xf]
    %v103 = vld [vmem:[%s2 + $0x8] sm:$0xf]
    %v104 = vld [vmem:[%s2 + $0xc] sm:$0xf]
    %v105 = vpack.c.bf16 %v100, %v99
    %v106 = vlaneseq
    %v107 = vshrl.u32 %v106, 7
    %v108 = vsub.s32 0, %v107
    %v109 = vrot.slane %v98, %v108
    %v114 = vunpack.c.l.b16 %v101
    %v115 = vunpack.c.l.b16 %v102
    %v116 = vunpack.c.l.b16 %v103
    %v117 = vunpack.c.l.b16 %v104
    %v118 = vpack.c.b16 %v115, %v114
    %v119 = vpack.c.b16 %v117, %v116
    %vm122 = vcmask 261120
    %v124 = vsel %vm122, %v105, 0
    %126 = vmatprep.subr.bf16.mxu0 0
    %127 = vmatpush1.bf16.msra.mxu0 %v118
    %128 = vmatprep.subr.bf16.mxu0 0
    %129 = vmatpush1.bf16.msra.mxu0 %v119
    %130 = vmatprep.subr.bf16.mxu0 0
    %131 = vmatpush1.bf16.msra.mxu0 0
    %132 = vmatprep.subr.bf16.mxu0 0
    %133 = vmatpush1.bf16.msra.mxu0 0
    %134 = vmatprep.subr.bf16.mxu0 0
    %135 = vmatpush1.bf16.msra.mxu0 0
    %136 = vmatprep.subr.bf16.mxu0 0
    %137 = vmatpush1.bf16.msra.mxu0 0
    %138 = vmatprep.subr.bf16.mxu0 0
    %139 = vmatpush1.bf16.msra.mxu0 0
    %140 = vmatprep.subr.bf16.mxu0 0
    %141 = vmatpush1.bf16.msra.mxu0 0
    %142 = vmatprep.subr.bf16.mxu0 0
    %143 = vmatpush1.bf16.msra.mxu0 0
    %144 = vmatprep.subr.bf16.mxu0 0
    %145 = vmatpush1.bf16.msra.mxu0 0
    %146 = vmatprep.subr.bf16.mxu0 0
    %147 = vmatpush1.bf16.msra.mxu0 0
    %148 = vmatprep.subr.bf16.mxu0 0
    %149 = vmatpush1.bf16.msra.mxu0 0
    %150 = vmatprep.subr.bf16.mxu0 0
    %151 = vmatpush1.bf16.msra.mxu0 0
    %152 = vmatprep.subr.bf16.mxu0 0
    %153 = vmatpush1.bf16.msra.mxu0 0
    %154 = vmatprep.subr.bf16.mxu0 0
    %155 = vmatpush1.bf16.msra.mxu0 0
    %156 = vmatprep.subr.bf16.mxu0 0
    %157 = vmatpush1.bf16.msra.mxu0 0
    %158 = vmatprep.mubr.bf16.mxu0 0
    %159 = vmatmul.mubr.bf16.gmra.mrb[0].mxu0 %v124
    %v160 = vpop.f32.mrb[0].mxu0
    %v161 = vadd.f32 %v109, %v160
    %v162 = vpop.f32.mrb[0].mxu0
    %v163 = vpop.f32.mrb[0].mxu0
    %v164 = vadd.f32 %v109, %v163
    %v165 = vpop.f32.mrb[0].mxu0
    %166 = vdwg.mxu0
    %v167 = vld [vmem:[%s1] sm:$0xff]
    %v168 = vld [vmem:[%s1 + $0x8] sm:$0xff]
    %v169 = vld [vmem:[#allocation2] sm:$0xf]
    %v170 = vld [vmem:[#allocation2 + $0x4] sm:$0xf]
    %v171 = vld [vmem:[#allocation2 + $0x8] sm:$0xf]
    %v172 = vld [vmem:[#allocation2 + $0xc] sm:$0xf]
    %v173 = vpack.c.bf16 %v168, %v167
    %v174 = vlaneseq
    %v175 = vshrl.u32 %v174, 7
    %v176 = vsub.s32 1, %v175
    %v177 = vrot.slane %v98, %v176
    %v182 = vunpack.c.l.b16 %v169
    %v183 = vunpack.c.l.b16 %v170
    %v184 = vunpack.c.l.b16 %v171
    %v185 = vunpack.c.l.b16 %v172
    %v186 = vpack.c.b16 %v183, %v182
    %v187 = vpack.c.b16 %v185, %v184
    %v191 = vsel %vm122, %v173, 0
    %193 = vmatprep.subr.bf16.mxu0 0
    %194 = vmatpush1.bf16.msra.mxu0 %v186
    %195 = vmatprep.subr.bf16.mxu0 0
    %196 = vmatpush1.bf16.msra.mxu0 %v187
    %197 = vmatprep.subr.bf16.mxu0 0
    %198 = vmatpush1.bf16.msra.mxu0 0
    %199 = vmatprep.subr.bf16.mxu0 0
    %200 = vmatpush1.bf16.msra.mxu0 0
    %201 = vmatprep.subr.bf16.mxu0 0
    %202 = vmatpush1.bf16.msra.mxu0 0
    %203 = vmatprep.subr.bf16.mxu0 0
    %204 = vmatpush1.bf16.msra.mxu0 0
    %205 = vmatprep.subr.bf16.mxu0 0
    %206 = vmatpush1.bf16.msra.mxu0 0
    %207 = vmatprep.subr.bf16.mxu0 0
    %208 = vmatpush1.bf16.msra.mxu0 0
    %209 = vmatprep.subr.bf16.mxu0 0
    %210 = vmatpush1.bf16.msra.mxu0 0
    %211 = vmatprep.subr.bf16.mxu0 0
    %212 = vmatpush1.bf16.msra.mxu0 0
    %213 = vmatprep.subr.bf16.mxu0 0
    %214 = vmatpush1.bf16.msra.mxu0 0
    %215 = vmatprep.subr.bf16.mxu0 0
    %216 = vmatpush1.bf16.msra.mxu0 0
    %217 = vmatprep.subr.bf16.mxu0 0
    %218 = vmatpush1.bf16.msra.mxu0 0
    %219 = vmatprep.subr.bf16.mxu0 0
    %220 = vmatpush1.bf16.msra.mxu0 0
    %221 = vmatprep.subr.bf16.mxu0 0
    %222 = vmatpush1.bf16.msra.mxu0 0
    %223 = vmatprep.subr.bf16.mxu0 0
    %224 = vmatpush1.bf16.msra.mxu0 0
    %225 = vmatprep.mubr.bf16.mxu0 0
    %226 = vmatmul.mubr.bf16.gmra.mrb[0].mxu0 %v191
    %v227 = vpop.f32.mrb[0].mxu0
    %v228 = vadd.f32 %v177, %v227
    %v229 = vpop.f32.mrb[0].mxu0
    %v230 = vpop.f32.mrb[0].mxu0
    %v231 = vadd.f32 %v177, %v230
    %v232 = vpop.f32.mrb[0].mxu0
    %233 = vdwg.mxu0
    %v234 = vsel %vm122, %v161, 0.0
    %235 = vadd.xlane.f32.xlu0 %v234
    %v236 = vpop.xlane.xlu0 %235
    %v237 = vsel %vm122, %v164, 0.0
    %238 = vadd.xlane.f32.xlu0 %v237
    %v239 = vpop.xlane.xlu0 %238
    %v240 = vsel %vm122, %v228, 0.0
    %241 = vadd.xlane.f32.xlu0 %v240
    %v242 = vpop.xlane.xlu0 %241
    %v243 = vsel %vm122, %v231, 0.0
    %244 = vadd.xlane.f32.xlu0 %v243
    %v245 = vpop.xlane.xlu0 %244
    %v246 = vrcp.pop 32.0
    %v247 = vmul.f32 %v236, %v246
    %v248 = vmul.f32 %v239, %v246
    %v249 = vmul.f32 %v242, %v246
    %v250 = vmul.f32 %v245, %v246
    %v251 = vsub.f32 %v161, %v247
    %v252 = vsub.f32 %v164, %v248
    %v253 = vsub.f32 %v228, %v249
    %v254 = vsub.f32 %v231, %v250
    %v255 = vmul.f32 %v251, %v251
    %v256 = vmul.f32 %v252, %v252
    %v257 = vmul.f32 %v253, %v253
    %v258 = vmul.f32 %v254, %v254
    %v259 = vsel %vm122, %v255, 0.0
    %260 = vadd.xlane.f32.xlu0 %v259
    %v261 = vpop.xlane.xlu0 %260
    %v262 = vsel %vm122, %v256, 0.0
    %263 = vadd.xlane.f32.xlu0 %v262
    %v264 = vpop.xlane.xlu0 %263
    %v265 = vsel %vm122, %v257, 0.0
    %266 = vadd.xlane.f32.xlu0 %v265
    %v267 = vpop.xlane.xlu0 %266
    %v268 = vsel %vm122, %v258, 0.0
    %269 = vadd.xlane.f32.xlu0 %v268
    %v270 = vpop.xlane.xlu0 %269
    %v271 = vmul.f32 %v261, %v246
    %v272 = vmul.f32 %v264, %v246
    %v273 = vmul.f32 %v267, %v246
    %v274 = vmul.f32 %v270, %v246
    %v275 = vadd.f32 %v271, 1e-05
    %v276 = vadd.f32 %v272, 1e-05
    %v277 = vadd.f32 %v273, 1e-05
    %v278 = vadd.f32 %v274, 1e-05
    %v279 = vrsqrt.pop %v275
    %v280 = vrsqrt.pop %v276
    %v281 = vrsqrt.pop %v277
    %v282 = vrsqrt.pop %v278
    %v283 = vmul.f32 %v251, %v279
    %v284 = vmul.f32 %v252, %v280
    %v285 = vmul.f32 %v253, %v281
    %v286 = vmul.f32 %v254, %v282
    %v287 = vlaneseq
    %v288 = vshrl.u32 %v287, 7
    %v289 = vsub.s32 2, %v288
    %v290 = vrot.slane %v98, %v289
    %v291 = vmul.f32 %v283, %v290
    %v292 = vmul.f32 %v284, %v290
    %v293 = vmul.f32 %v285, %v290
    %v294 = vmul.f32 %v286, %v290
    %v295 = vlaneseq
    %v296 = vshrl.u32 %v295, 7
    %v297 = vsub.s32 3, %v296
    %v298 = vrot.slane %v98, %v297
    %v299 = vadd.f32 %v291, %v298
    %v300 = vadd.f32 %v292, %v298
    %v301 = vadd.f32 %v293, %v298
    %v302 = vadd.f32 %v294, %v298
    %v303 = vld [vmem:[#allocation5] sm:$0xf]
    %v304 = vld [vmem:[#allocation5 + $0x4] sm:$0xf]
    %v305 = vld [vmem:[#allocation5 + $0x8] sm:$0xf]
    %v306 = vld [vmem:[#allocation5 + $0xc] sm:$0xf]
    %v307 = vpack.c.bf16 %v300, %v299
    %v308 = vpack.c.bf16 %v302, %v301
    %v309 = vld [vmem:[%s6] sm:$0x1]
    %v311 = vlaneseq
    %v312 = vshrl.u32 %v311, 7
    %v313 = vsub.s32 0, %v312
    %v314 = vrot.slane %v309, %v313
    %v320 = vunpack.c.l.b16 %v303
    %v321 = vunpack.c.l.b16 %v304
    %v322 = vunpack.c.l.b16 %v305
    %v323 = vunpack.c.l.b16 %v306
    %v324 = vpack.c.b16 %v321, %v320
    %v325 = vpack.c.b16 %v323, %v322
    %v329 = vsel %vm122, %v307, 0
    %v332 = vsel %vm122, %v308, 0
    %334 = vmatprep.subr.bf16.mxu0 0
    %335 = vmatpush1.bf16.msra.mxu0 %v324
    %336 = vmatprep.subr.bf16.mxu0 0
    %337 = vmatpush1.bf16.msra.mxu0 %v325
    %338 = vmatprep.subr.bf16.mxu0 0
    %339 = vmatpush1.bf16.msra.mxu0 0
    %340 = vmatprep.subr.bf16.mxu0 0
    %341 = vmatpush1.bf16.msra.mxu0 0
    %342 = vmatprep.subr.bf16.mxu0 0
    %343 = vmatpush1.bf16.msra.mxu0 0
    %344 = vmatprep.subr.bf16.mxu0 0
    %345 = vmatpush1.bf16.msra.mxu0 0
    %346 = vmatprep.subr.bf16.mxu0 0
    %347 = vmatpush1.bf16.msra.mxu0 0
    %348 = vmatprep.subr.bf16.mxu0 0
    %349 = vmatpush1.bf16.msra.mxu0 0
    %350 = vmatprep.subr.bf16.mxu0 0
    %351 = vmatpush1.bf16.msra.mxu0 0
    %352 = vmatprep.subr.bf16.mxu0 0
    %353 = vmatpush1.bf16.msra.mxu0 0
    %354 = vmatprep.subr.bf16.mxu0 0
    %355 = vmatpush1.bf16.msra.mxu0 0
    %356 = vmatprep.subr.bf16.mxu0 0
    %357 = vmatpush1.bf16.msra.mxu0 0
    %358 = vmatprep.subr.bf16.mxu0 0
    %359 = vmatpush1.bf16.msra.mxu0 0
    %360 = vmatprep.subr.bf16.mxu0 0
    %361 = vmatpush1.bf16.msra.mxu0 0
    %362 = vmatprep.subr.bf16.mxu0 0
    %363 = vmatpush1.bf16.msra.mxu0 0
    %364 = vmatprep.subr.bf16.mxu0 0
    %365 = vmatpush1.bf16.msra.mxu0 0
    %366 = vmatprep.mubr.bf16.mxu0 0
    %367 = vmatmul.mubr.bf16.gmra.mrb[0].mxu0 %v329
    %v368 = vpop.f32.mrb[0].mxu0
    %v369 = vadd.f32 %v314, %v368
    %v370 = vpop.f32.mrb[0].mxu0
    %v371 = vpop.f32.mrb[0].mxu0
    %v372 = vadd.f32 %v314, %v371
    %v373 = vpop.f32.mrb[0].mxu0
    %374 = vmatprep.mubr.bf16.mxu0 0
    %375 = vmatmul.mubr.bf16.gmra.mrb[0].mxu0 %v332
    %v376 = vpop.f32.mrb[0].mxu0
    %v377 = vadd.f32 %v314, %v376
    %v378 = vpop.f32.mrb[0].mxu0
    %v379 = vpop.f32.mrb[0].mxu0
    %v380 = vadd.f32 %v314, %v379
    %v381 = vpop.f32.mrb[0].mxu0
    %382 = vdwg.mxu0
    %v383 = vmul.f32 %v369, 0.17677669
    %v384 = vmul.f32 %v372, 0.17677669
    %v385 = vmul.f32 %v377, 0.17677669
    %v386 = vmul.f32 %v380, 0.17677669
    %v387 = vpack.c.bf16 %v384, %v383
    %v388 = vpack.c.bf16 %v386, %v385
    %v389 = vpack.c.bf16 %v372, %v369
    %v390 = vpack.c.bf16 %v380, %v377
    %v391 = vld [vmem:[%s11] sm:$0xff]
    %v392 = vld [vmem:[%s11 + $0x8] sm:$0xff]
    %v393 = vld [vmem:[%s11 + $0x10] sm:$0xff]
    %v394 = vld [vmem:[%s11 + $0x18] sm:$0xff]
    %397 = vrot.lane.b32.xlu0 %v389, 96
    %v398 = vpop.permute.xlu0 %397
    %399 = vrot.lane.b32.xlu0 %v390, 96
    %v400 = vpop.permute.xlu0 %399
    %v402 = vsel %vm122, %v387, 0
    %v405 = vsel %vm122, %v388, 0
    %v408 = vsel %vm122, %v398, 0
    %v411 = vsel %vm122, %v400, 0
    %413 = vmatprep.subr.bf16.mxu0 0
    %414 = vmatpush1.bf16.xpose.msra.mxu0 %v408
    %415 = vmatprep.subr.bf16.mxu0 0
    %416 = vmatpush1.bf16.xpose.msra.mxu0 %v411
    %417 = vmatprep.subr.bf16.mxu0 0
    %418 = vmatpush1.bf16.xpose.msra.mxu0 0
    %419 = vmatprep.subr.bf16.mxu0 0
    %420 = vmatpush1.bf16.xpose.msra.mxu0 0
    %421 = vmatprep.subr.bf16.mxu0 0
    %422 = vmatpush1.bf16.xpose.msra.mxu0 0
    %423 = vmatprep.subr.bf16.mxu0 0
    %424 = vmatpush1.bf16.xpose.msra.mxu0 0
    %425 = vmatprep.subr.bf16.mxu0 0
    %426 = vmatpush1.bf16.xpose.msra.mxu0 0
    %427 = vmatprep.subr.bf16.mxu0 0
    %428 = vmatpush1.bf16.xpose.msra.mxu0 0
    %429 = vmatprep.subr.bf16.mxu0 0
    %430 = vmatpush1.bf16.xpose.msra.mxu0 0
    %431 = vmatprep.subr.bf16.mxu0 0
    %432 = vmatpush1.bf16.xpose.msra.mxu0 0
    %433 = vmatprep.subr.bf16.mxu0 0
    %434 = vmatpush1.bf16.xpose.msra.mxu0 0
    %435 = vmatprep.subr.bf16.mxu0 0
    %436 = vmatpush1.bf16.xpose.msra.mxu0 0
    %437 = vmatprep.subr.bf16.mxu0 0
    %438 = vmatpush1.bf16.xpose.msra.mxu0 0
    %439 = vmatprep.subr.bf16.mxu0 0
    %440 = vmatpush1.bf16.xpose.msra.mxu0 0
    %441 = vmatprep.subr.bf16.mxu0 0
    %442 = vmatpush1.bf16.xpose.msra.mxu0 0
    %443 = vmatprep.subr.bf16.mxu0 0
    %444 = vmatpush1.bf16.xpose.msra.mxu0 0
    %445 = vmatprep.mubr.bf16.mxu0 0
    %446 = vmatmul.mubr.bf16.gmra.mrb[0].mxu0 %v402
    %v447 = vpop.f32.mrb[0].mxu0
    %v448 = vadd.f32 %v391, %v447
    %v449 = vpop.f32.mrb[0].mxu0
    %v450 = vpop.f32.mrb[0].mxu0
    %v451 = vadd.f32 %v392, %v450
    %v452 = vpop.f32.mrb[0].mxu0
    %453 = vmatprep.mubr.bf16.mxu0 0
    %454 = vmatmul.mubr.bf16.gmra.mrb[0].mxu0 %v405
    %v455 = vpop.f32.mrb[0].mxu0
    %v456 = vadd.f32 %v393, %v455
    %v457 = vpop.f32.mrb[0].mxu0
    %v458 = vpop.f32.mrb[0].mxu0
    %v459 = vadd.f32 %v394, %v458
    %v460 = vpop.f32.mrb[0].mxu0
    %461 = vdwg.mxu0
    %v462 = vsel %vm122, %v448, -inf
    %463 = vmax.xlane.f32.xlu0 %v462
    %v464 = vpop.xlane.xlu0 %463
    %v465 = vsel %vm122, %v451, -inf
    %466 = vmax.xlane.f32.xlu0 %v465
    %v467 = vpop.xlane.xlu0 %466
    %v468 = vsel %vm122, %v456, -inf
    %469 = vmax.xlane.f32.xlu0 %v468
    %v470 = vpop.xlane.xlu0 %469
    %v471 = vsel %vm122, %v459, -inf
    %472 = vmax.xlane.f32.xlu0 %v471
    %v473 = vpop.xlane.xlu0 %472
    %v474 = vsub.f32 %v448, %v464
    %v475 = vsub.f32 %v451, %v467
    %v476 = vsub.f32 %v456, %v470
    %v477 = vsub.f32 %v459, %v473
    %v478 = vmul.f32 %v474, 1.442695
    %v479 = vpow.pop %v478
    %v480 = vmul.f32 %v475, 1.442695
    %v481 = vpow.pop %v480
    %v482 = vmul.f32 %v476, 1.442695
    %v483 = vpow.pop %v482
    %v484 = vmul.f32 %v477, 1.442695
    %v485 = vpow.pop %v484
    %v486 = vsel %vm122, %v479, 0.0
    %487 = vadd.xlane.f32.xlu0 %v486
    %v488 = vpop.xlane.xlu0 %487
    %v489 = vsel %vm122, %v481, 0.0
    %490 = vadd.xlane.f32.xlu0 %v489
    %v491 = vpop.xlane.xlu0 %490
    %v492 = vsel %vm122, %v483, 0.0
    %493 = vadd.xlane.f32.xlu0 %v492
    %v494 = vpop.xlane.xlu0 %493
    %v495 = vsel %vm122, %v485, 0.0
    %496 = vadd.xlane.f32.xlu0 %v495
    %v497 = vpop.xlane.xlu0 %496
    %v498 = vrcp.pop %v488
    %v499 = vrcp.pop %v491
    %v500 = vrcp.pop %v494
    %v501 = vrcp.pop %v497
    %v502 = vmul.f32 %v479, %v498
    %v503 = vmul.f32 %v481, %v499
    %v504 = vmul.f32 %v483, %v500
    %v505 = vmul.f32 %v485, %v501
    %v506 = vpack.c.bf16 %v503, %v502
    %v507 = vpack.c.bf16 %v505, %v504
    %508 = vrot.lane.b32.xlu0 %v389, 64
    %v509 = vpop.permute.xlu0 %508
    %510 = vrot.lane.b32.xlu0 %v390, 64
    %v511 = vpop.permute.xlu0 %510
    %v515 = vsel %vm122, %v506, 0
    %v518 = vsel %vm122, %v507, 0
    %520 = vmatprep.subr.bf16.mxu0 0
    %521 = vmatpush1.bf16.msra.mxu0 %v509
    %522 = vmatprep.subr.bf16.mxu0 0
    %523 = vmatpush1.bf16.msra.mxu0 %v511
    %524 = vmatprep.subr.bf16.mxu0 0
    %525 = vmatpush1.bf16.msra.mxu0 0
    %526 = vmatprep.subr.bf16.mxu0 0
    %527 = vmatpush1.bf16.msra.mxu0 0
    %528 = vmatprep.subr.bf16.mxu0 0
    %529 = vmatpush1.bf16.msra.mxu0 0
    %530 = vmatprep.subr.bf16.mxu0 0
    %531 = vmatpush1.bf16.msra.mxu0 0
    %532 = vmatprep.subr.bf16.mxu0 0
    %533 = vmatpush1.bf16.msra.mxu0 0
    %534 = vmatprep.subr.bf16.mxu0 0
    %535 = vmatpush1.bf16.msra.mxu0 0
    %536 = vmatprep.subr.bf16.mxu0 0
    %537 = vmatpush1.bf16.msra.mxu0 0
    %538 = vmatprep.subr.bf16.mxu0 0
    %539 = vmatpush1.bf16.msra.mxu0 0
    %540 = vmatprep.subr.bf16.mxu0 0
    %541 = vmatpush1.bf16.msra.mxu0 0
    %542 = vmatprep.subr.bf16.mxu0 0
    %543 = vmatpush1.bf16.msra.mxu0 0
    %544 = vmatprep.subr.bf16.mxu0 0
    %545 = vmatpush1.bf16.msra.mxu0 0
    %546 = vmatprep.subr.bf16.mxu0 0
    %547 = vmatpush1.bf16.msra.mxu0 0
    %548 = vmatprep.subr.bf16.mxu0 0
    %549 = vmatpush1.bf16.msra.mxu0 0
    %550 = vmatprep.subr.bf16.mxu0 0
    %551 = vmatpush1.bf16.msra.mxu0 0
    %552 = vmatprep.mubr.bf16.mxu0 0
    %553 = vmatmul.mubr.bf16.gmra.mrb[0].mxu0 %v515
    %v554 = vpop.f32.mrb[0].mxu0
    %v555 = vadd.f32 0.0, %v554
    %v556 = vpop.f32.mrb[0].mxu0
    %v557 = vpop.f32.mrb[0].mxu0
    %v558 = vadd.f32 0.0, %v557
    %v559 = vpop.f32.mrb[0].mxu0
    %560 = vmatprep.mubr.bf16.mxu0 0
    %561 = vmatmul.mubr.bf16.gmra.mrb[0].mxu0 %v518
    %v562 = vpop.f32.mrb[0].mxu0
    %v563 = vadd.f32 0.0, %v562
    %v564 = vpop.f32.mrb[0].mxu0
    %v565 = vpop.f32.mrb[0].mxu0
    %v566 = vadd.f32 0.0, %v565
    %v567 = vpop.f32.mrb[0].mxu0
    %568 = vdwg.mxu0
    %v569 = vld [vmem:[#allocation7] sm:$0xf]
    %v570 = vld [vmem:[#allocation7 + $0x4] sm:$0xf]
    %v571 = vld [vmem:[#allocation7 + $0x8] sm:$0xf]
    %v572 = vld [vmem:[#allocation7 + $0xc] sm:$0xf]
    %v573 = vpack.c.bf16 %v558, %v555
    %v574 = vpack.c.bf16 %v566, %v563
    %v579 = vunpack.c.l.b16 %v569
    %v580 = vunpack.c.l.b16 %v570
    %v581 = vunpack.c.l.b16 %v571
    %v582 = vunpack.c.l.b16 %v572
    %v583 = vpack.c.b16 %v580, %v579
    %v584 = vpack.c.b16 %v582, %v581
    %v588 = vsel %vm122, %v573, 0
    %v591 = vsel %vm122, %v574, 0
    %593 = vmatprep.subr.bf16.mxu0 0
    %594 = vmatpush1.bf16.msra.mxu0 %v583
    %595 = vmatprep.subr.bf16.mxu0 0
    %596 = vmatpush1.bf16.msra.mxu0 %v584
    %597 = vmatprep.subr.bf16.mxu0 0
    %598 = vmatpush1.bf16.msra.mxu0 0
    %599 = vmatprep.subr.bf16.mxu0 0
    %600 = vmatpush1.bf16.msra.mxu0 0
    %601 = vmatprep.subr.bf16.mxu0 0
    %602 = vmatpush1.bf16.msra.mxu0 0
    %603 = vmatprep.subr.bf16.mxu0 0
    %604 = vmatpush1.bf16.msra.mxu0 0
    %605 = vmatprep.subr.bf16.mxu0 0
    %606 = vmatpush1.bf16.msra.mxu0 0
    %607 = vmatprep.subr.bf16.mxu0 0
    %608 = vmatpush1.bf16.msra.mxu0 0
    %609 = vmatprep.subr.bf16.mxu0 0
    %610 = vmatpush1.bf16.msra.mxu0 0
    %611 = vmatprep.subr.bf16.mxu0 0
    %612 = vmatpush1.bf16.msra.mxu0 0
    %613 = vmatprep.subr.bf16.mxu0 0
    %614 = vmatpush1.bf16.msra.mxu0 0
    %615 = vmatprep.subr.bf16.mxu0 0
    %616 = vmatpush1.bf16.msra.mxu0 0
    %617 = vmatprep.subr.bf16.mxu0 0
    %618 = vmatpush1.bf16.msra.mxu0 0
    %619 = vmatprep.subr.bf16.mxu0 0
    %620 = vmatpush1.bf16.msra.mxu0 0
    %621 = vmatprep.subr.bf16.mxu0 0
    %622 = vmatpush1.bf16.msra.mxu0 0
    %623 = vmatprep.subr.bf16.mxu0 0
    %624 = vmatpush1.bf16.msra.mxu0 0
    %625 = vmatprep.mubr.bf16.mxu0 0
    %626 = vmatmul.mubr.bf16.gmra.mrb[0].mxu0 %v588
    %v627 = vpop.f32.mrb[0].mxu0
    %v628 = vadd.f32 0.0, %v627
    %v629 = vpop.f32.mrb[0].mxu0
    %v630 = vpop.f32.mrb[0].mxu0
    %v631 = vadd.f32 0.0, %v630
    %v632 = vpop.f32.mrb[0].mxu0
    %633 = vmatprep.mubr.bf16.mxu0 0
    %634 = vmatmul.mubr.bf16.gmra.mrb[0].mxu0 %v591
    %v635 = vpop.f32.mrb[0].mxu0
    %v636 = vadd.f32 0.0, %v635
    %v637 = vpop.f32.mrb[0].mxu0
    %v638 = vpop.f32.mrb[0].mxu0
    %v639 = vadd.f32 0.0, %v638
    %v640 = vpop.f32.mrb[0].mxu0
    %641 = vdwg.mxu0
    %v642 = vadd.f32 %v161, %v628
    %v643 = vadd.f32 %v164, %v631
    %v644 = vadd.f32 %v228, %v636
    %v645 = vadd.f32 %v231, %v639
    %v646 = vlaneseq
    %v647 = vshrl.u32 %v646, 7
    %v648 = vsub.s32 4, %v647
    %v649 = vrot.slane %v98, %v648
    %v650 = vadd.f32 %v642, %v649
    %v651 = vadd.f32 %v643, %v649
    %v652 = vadd.f32 %v644, %v649
    %v653 = vadd.f32 %v645, %v649
    %v654 = vsel %vm122, %v650, 0.0
    %655 = vadd.xlane.f32.xlu0 %v654
    %v656 = vpop.xlane.xlu0 %655
    %v657 = vsel %vm122, %v651, 0.0
    %658 = vadd.xlane.f32.xlu0 %v657
    %v659 = vpop.xlane.xlu0 %658
    %v660 = vsel %vm122, %v652, 0.0
    %661 = vadd.xlane.f32.xlu0 %v660
    %v662 = vpop.xlane.xlu0 %661
    %v663 = vsel %vm122, %v653, 0.0
    %664 = vadd.xlane.f32.xlu0 %v663
    %v665 = vpop.xlane.xlu0 %664
    %v666 = vmul.f32 %v656, %v246
    %v667 = vmul.f32 %v659, %v246
    %v668 = vmul.f32 %v662, %v246
    %v669 = vmul.f32 %v665, %v246
    %v670 = vsub.f32 %v650, %v666
    %v671 = vsub.f32 %v651, %v667
    %v672 = vsub.f32 %v652, %v668
    %v673 = vsub.f32 %v653, %v669
    %v674 = vmul.f32 %v670, %v670
    %v675 = vmul.f32 %v671, %v671
    %v676 = vmul.f32 %v672, %v672
    %v677 = vmul.f32 %v673, %v673
    %v678 = vsel %vm122, %v674, 0.0
    %679 = vadd.xlane.f32.xlu0 %v678
    %v680 = vpop.xlane.xlu0 %679
    %v681 = vsel %vm122, %v675, 0.0
    %682 = vadd.xlane.f32.xlu0 %v681
    %v683 = vpop.xlane.xlu0 %682
    %v684 = vsel %vm122, %v676, 0.0
    %685 = vadd.xlane.f32.xlu0 %v684
    %v686 = vpop.xlane.xlu0 %685
    %v687 = vsel %vm122, %v677, 0.0
    %688 = vadd.xlane.f32.xlu0 %v687
    %v689 = vpop.xlane.xlu0 %688
    %v690 = vmul.f32 %v680, %v246
    %v691 = vmul.f32 %v683, %v246
    %v692 = vmul.f32 %v686, %v246
    %v693 = vmul.f32 %v689, %v246
    %v694 = vadd.f32 %v690, 1e-05
    %v695 = vadd.f32 %v691, 1e-05
    %v696 = vadd.f32 %v692, 1e-05
    %v697 = vadd.f32 %v693, 1e-05
    %v698 = vrsqrt.pop %v694
    %v699 = vrsqrt.pop %v695
    %v700 = vrsqrt.pop %v696
    %v701 = vrsqrt.pop %v697
    %v702 = vmul.f32 %v670, %v698
    %v703 = vmul.f32 %v671, %v699
    %v704 = vmul.f32 %v672, %v700
    %v705 = vmul.f32 %v673, %v701
    %v706 = vlaneseq
    %v707 = vshrl.u32 %v706, 7
    %v708 = vsub.s32 5, %v707
    %v709 = vrot.slane %v98, %v708
    %v710 = vmul.f32 %v702, %v709
    %v711 = vmul.f32 %v703, %v709
    %v712 = vmul.f32 %v704, %v709
    %v713 = vmul.f32 %v705, %v709
    %v714 = vlaneseq
    %v715 = vshrl.u32 %v714, 7
    %v716 = vsub.s32 6, %v715
    %v717 = vrot.slane %v98, %v716
    %v718 = vadd.f32 %v710, %v717
    %v719 = vadd.f32 %v711, %v717
    %v720 = vadd.f32 %v712, %v717
    %v721 = vadd.f32 %v713, %v717
    %v722 = vld [vmem:[#allocation8] sm:$0xf]
    %v723 = vld [vmem:[#allocation8 + $0x4] sm:$0xf]
    %v724 = vld [vmem:[#allocation8 + $0x8] sm:$0xf]
    %v725 = vld [vmem:[#allocation8 + $0xc] sm:$0xf]
    %v726 = vpack.c.bf16 %v719, %v718
    %v727 = vpack.c.bf16 %v721, %v720
    %v728 = vld [vmem:[%s9] sm:$0x1]
    %v730 = vlaneseq
    %v731 = vshrl.u32 %v730, 7
    %v732 = vsub.s32 0, %v731
    %v733 = vrot.slane %v728, %v732
    %v739 = vunpack.c.l.b16 %v722
    %v740 = vunpack.c.l.b16 %v723
    %v741 = vunpack.c.l.b16 %v724
    %v742 = vunpack.c.l.b16 %v725
    %v743 = vpack.c.b16 %v740, %v739
    %v744 = vpack.c.b16 %v742, %v741
    %v748 = vsel %vm122, %v726, 0
    %v751 = vsel %vm122, %v727, 0
    %753 = vmatprep.subr.bf16.mxu0 0
    %754 = vmatpush1.bf16.msra.mxu0 %v743
    %755 = vmatprep.subr.bf16.mxu0 0
    %756 = vmatpush1.bf16.msra.mxu0 %v744
    %757 = vmatprep.subr.bf16.mxu0 0
    %758 = vmatpush1.bf16.msra.mxu0 0
    %759 = vmatprep.subr.bf16.mxu0 0
    %760 = vmatpush1.bf16.msra.mxu0 0
    %761 = vmatprep.subr.bf16.mxu0 0
    %762 = vmatpush1.bf16.msra.mxu0 0
    %763 = vmatprep.subr.bf16.mxu0 0
    %764 = vmatpush1.bf16.msra.mxu0 0
    %765 = vmatprep.subr.bf16.mxu0 0
    %766 = vmatpush1.bf16.msra.mxu0 0
    %767 = vmatprep.subr.bf16.mxu0 0
    %768 = vmatpush1.bf16.msra.mxu0 0
    %769 = vmatprep.subr.bf16.mxu0 0
    %770 = vmatpush1.bf16.msra.mxu0 0
    %771 = vmatprep.subr.bf16.mxu0 0
    %772 = vmatpush1.bf16.msra.mxu0 0
    %773 = vmatprep.subr.bf16.mxu0 0
    %774 = vmatpush1.bf16.msra.mxu0 0
    %775 = vmatprep.subr.bf16.mxu0 0
    %776 = vmatpush1.bf16.msra.mxu0 0
    %777 = vmatprep.subr.bf16.mxu0 0
    %778 = vmatpush1.bf16.msra.mxu0 0
    %779 = vmatprep.subr.bf16.mxu0 0
    %780 = vmatpush1.bf16.msra.mxu0 0
    %781 = vmatprep.subr.bf16.mxu0 0
    %782 = vmatpush1.bf16.msra.mxu0 0
    %783 = vmatprep.subr.bf16.mxu0 0
    %784 = vmatpush1.bf16.msra.mxu0 0
    %785 = vmatprep.mubr.bf16.mxu0 0
    %786 = vmatmul.mubr.bf16.gmra.mrb[0].mxu0 %v748
    %v787 = vpop.f32.mrb[0].mxu0
    %v788 = vadd.f32 %v733, %v787
    %v789 = vpop.f32.mrb[0].mxu0
    %v790 = vpop.f32.mrb[0].mxu0
    %v791 = vadd.f32 %v733, %v790
    %v792 = vpop.f32.mrb[0].mxu0
    %793 = vmatprep.mubr.bf16.mxu0 0
    %794 = vmatmul.mubr.bf16.gmra.mrb[0].mxu0 %v751
    %v795 = vpop.f32.mrb[0].mxu0
    %v796 = vadd.f32 %v733, %v795
    %v797 = vpop.f32.mrb[0].mxu0
    %v798 = vpop.f32.mrb[0].mxu0
    %v799 = vadd.f32 %v733, %v798
    %v800 = vpop.f32.mrb[0].mxu0
    %801 = vdwg.mxu0
    %v802 = vmul.f32 %v788, 1.702
    %v803 = vmul.f32 %v791, 1.702
    %v804 = vmul.f32 %v796, 1.702
    %v805 = vmul.f32 %v799, 1.702
    %v806 = vxor.u32 %v802, 2147483648
    %v807 = vxor.u32 %v803, 2147483648
    %v808 = vxor.u32 %v804, 2147483648
    %v809 = vxor.u32 %v805, 2147483648
    %v810 = vmul.f32 %v806, 1.442695
    %v811 = vpow.pop %v810
    %v812 = vmul.f32 %v807, 1.442695
    %v813 = vpow.pop %v812
    %v814 = vmul.f32 %v808, 1.442695
    %v815 = vpow.pop %v814
    %v816 = vmul.f32 %v809, 1.442695
    %v817 = vpow.pop %v816
    %v818 = vadd.f32 %v811, 1.0
    %v819 = vadd.f32 %v813, 1.0
    %v820 = vadd.f32 %v815, 1.0
    %v821 = vadd.f32 %v817, 1.0
    %v822 = vrcp.pop %v818
    %v823 = vmul.f32 1.0, %v822
    %v824 = vrcp.pop %v819
    %v825 = vmul.f32 1.0, %v824
    %v826 = vrcp.pop %v820
    %v827 = vmul.f32 1.0, %v826
    %v828 = vrcp.pop %v821
    %v829 = vmul.f32 1.0, %v828
    %v830 = vmul.f32 %v788, %v823
    %v831 = vmul.f32 %v791, %v825
    %v832 = vmul.f32 %v796, %v827
    %v833 = vmul.f32 %v799, %v829
    %v834 = vld [vmem:[%s10] sm:$0xf]
    %v835 = vld [vmem:[%s10 + $0x4] sm:$0xf]
    %v836 = vld [vmem:[%s10 + $0x8] sm:$0xf]
    %v837 = vld [vmem:[%s10 + $0xc] sm:$0xf]
    %v838 = vld [vmem:[%s10 + $0x10] sm:$0xf]
    %v839 = vld [vmem:[%s10 + $0x14] sm:$0xf]
    %v840 = vld [vmem:[%s10 + $0x18] sm:$0xf]
    %v841 = vld [vmem:[%s10 + $0x1c] sm:$0xf]
    %v842 = vld [vmem:[%s10 + $0x20] sm:$0xf]
    %v843 = vld [vmem:[%s10 + $0x24] sm:$0xf]
    %v844 = vld [vmem:[%s10 + $0x28] sm:$0xf]
    %v845 = vld [vmem:[%s10 + $0x2c] sm:$0xf]
    %v846 = vld [vmem:[%s10 + $0x30] sm:$0xf]
    %v847 = vld [vmem:[%s10 + $0x34] sm:$0xf]
    %v848 = vld [vmem:[%s10 + $0x38] sm:$0xf]
    %v849 = vld [vmem:[%s10 + $0x3c] sm:$0xf]
    %v850 = vpack.c.bf16 %v831, %v830
    %v851 = vpack.c.bf16 %v833, %v832
    %v868 = vunpack.c.l.b16 %v834
    %v869 = vunpack.c.l.b16 %v835
    %v870 = vunpack.c.l.b16 %v836
    %v871 = vunpack.c.l.b16 %v837
    %v872 = vunpack.c.l.b16 %v838
    %v873 = vunpack.c.l.b16 %v839
    %v874 = vunpack.c.l.b16 %v840
    %v875 = vunpack.c.l.b16 %v841
    %v876 = vunpack.c.l.b16 %v842
    %v877 = vunpack.c.l.b16 %v843
    %v878 = vunpack.c.l.b16 %v844
    %v879 = vunpack.c.l.b16 %v845
    %v880 = vunpack.c.l.b16 %v846
    %v881 = vunpack.c.l.b16 %v847
    %v882 = vunpack.c.l.b16 %v848
    %v883 = vunpack.c.l.b16 %v849
    %v884 = vpack.c.b16 %v869, %v868
    %v885 = vpack.c.b16 %v871, %v870
    %v886 = vpack.c.b16 %v873, %v872
    %v887 = vpack.c.b16 %v875, %v874
    %v888 = vpack.c.b16 %v877, %v876
    %v889 = vpack.c.b16 %v879, %v878
    %v890 = vpack.c.b16 %v881, %v880
    %v891 = vpack.c.b16 %v883, %v882
    %900 = vmatprep.subr.bf16.mxu0 0
    %901 = vmatpush1.bf16.msra.mxu0 %v884
    %902 = vmatprep.subr.bf16.mxu0 0
    %903 = vmatpush1.bf16.msra.mxu0 %v885
    %904 = vmatprep.subr.bf16.mxu0 0
    %905 = vmatpush1.bf16.msra.mxu0 %v886
    %906 = vmatprep.subr.bf16.mxu0 0
    %907 = vmatpush1.bf16.msra.mxu0 %v887
    %908 = vmatprep.subr.bf16.mxu0 0
    %909 = vmatpush1.bf16.msra.mxu0 %v888
    %910 = vmatprep.subr.bf16.mxu0 0
    %911 = vmatpush1.bf16.msra.mxu0 %v889
    %912 = vmatprep.subr.bf16.mxu0 0
    %913 = vmatpush1.bf16.msra.mxu0 %v890
    %914 = vmatprep.subr.bf16.mxu0 0
    %915 = vmatpush1.bf16.msra.mxu0 %v891
    %916 = vmatprep.subr.bf16.mxu0 0
    %917 = vmatpush1.bf16.msra.mxu0 0
    %918 = vmatprep.subr.bf16.mxu0 0
    %919 = vmatpush1.bf16.msra.mxu0 0
    %920 = vmatprep.subr.bf16.mxu0 0
    %921 = vmatpush1.bf16.msra.mxu0 0
    %922 = vmatprep.subr.bf16.mxu0 0
    %923 = vmatpush1.bf16.msra.mxu0 0
    %924 = vmatprep.subr.bf16.mxu0 0
    %925 = vmatpush1.bf16.msra.mxu0 0
    %926 = vmatprep.subr.bf16.mxu0 0
    %927 = vmatpush1.bf16.msra.mxu0 0
    %928 = vmatprep.subr.bf16.mxu0 0
    %929 = vmatpush1.bf16.msra.mxu0 0
    %930 = vmatprep.subr.bf16.mxu0 0
    %931 = vmatpush1.bf16.msra.mxu0 0
    %932 = vmatprep.mubr.bf16.mxu0 0
    %933 = vmatmul.mubr.bf16.gmra.mrb[0].mxu0 %v850
    %v934 = vpop.f32.mrb[0].mxu0
    %v935 = vadd.f32 0.0, %v934
    %v936 = vpop.f32.mrb[0].mxu0
    %v937 = vpop.f32.mrb[0].mxu0
    %v938 = vadd.f32 0.0, %v937
    %v939 = vpop.f32.mrb[0].mxu0
    %940 = vmatprep.mubr.bf16.mxu0 0
    %941 = vmatmul.mubr.bf16.gmra.mrb[0].mxu0 %v851
    %v942 = vpop.f32.mrb[0].mxu0
    %v943 = vadd.f32 0.0, %v942
    %v944 = vpop.f32.mrb[0].mxu0
    %v945 = vpop.f32.mrb[0].mxu0
    %v946 = vadd.f32 0.0, %v945
    %v947 = vpop.f32.mrb[0].mxu0
    %948 = vdwg.mxu0
    %v949 = vadd.f32 %v650, %v935
    %v950 = vadd.f32 %v651, %v938
    %v951 = vadd.f32 %v652, %v943
    %v952 = vadd.f32 %v653, %v946
    %v953 = vlaneseq
    %v954 = vshrl.u32 %v953, 7
    %v955 = vsub.s32 7, %v954
    %v956 = vrot.slane %v98, %v955
    %v957 = vadd.f32 %v949, %v956
    %v958 = vadd.f32 %v950, %v956
    %v959 = vadd.f32 %v951, %v956
    %v960 = vadd.f32 %v952, %v956
    %961 = vst.msk [vmem:[#allocation10] sm:$0xff] %vm122, %v957
    %962 = vst.msk [vmem:[#allocation10 + $0x8] sm:$0xff] %vm122, %v958
    %963 = vst.msk [vmem:[#allocation10 + $0x10] sm:$0xff] %vm122, %v959
    %964 = vst.msk [vmem:[#allocation10 + $0x18] sm:$0xff] %vm122, %v960
    // Predicated region
    $region66: #{tpu_custom_call.1} parent=1 // pred_check
      _
    $region67: #{tpu_custom_call.1} parent=1 // pred_check_branch
      %966 = sbr.rel (0) target = $region69
    $region68: #{tpu_custom_call.1} parent=1 // pred_region
      %s968 = ssub.s32 512, 512
      %969 = vsyncadd [#allocation4], %s968
      %s970 = sshll.u32 [#allocation10], 4
      %s971 = int_to_ptr.vmem [resolvable:$true] %s970
      %976 = dma.vmem_to_hbm [thread:$0]  %s971, 512, %s12, [#allocation4], 128, 128, 8
    $region69: #{tpu_custom_call.1} parent=1 // pred_fallthru
      _
    // Predicated region
    $region70: #{tpu_custom_call.1} parent=1 // pred_check
      _
    $region71: #{tpu_custom_call.1} parent=1 // pred_check_branch
      %978 = sbr.rel (0) target = $region73
    $region72: #{tpu_custom_call.1} parent=1 // pred_region
      %979 = dma.done [#allocation4], 512
    $region73: #{tpu_custom_call.1} parent=1 // pred_fallthru
      _
    %980 = vsyncpa [#allocation3], 1
    %981 = vsyncpa [#allocation6], 1
    %982 = vsyncpa [#allocation9], 1
    %983 = vsyncpa [#allocation4], 1

</llo_original>
